<compile_context>
chip_gen: v6e
topology: v6e:2x2x1
jax: 0.10.0
libtpu: 0.0.40
codegen_flags: <defaults>
</compile_context>

<pallas_src>
import functools

import jax
import jax.numpy as jnp
from jax import lax
from jax.experimental import pallas as pl
from jax.experimental.pallas import tpu as pltpu

LANES = 128
MAX_BLOCK_ROWS = 2048   # (2048, 128) f32 block = 1 MiB; 2 inputs x 2 buffers ~ 4 MiB VMEM


def _cdiv(a, b):
    return (a + b - 1) // b


def _round_up(x, m):
    return _cdiv(x, m) * m


def _sublane_align(dtype):
    # f32 -> 8 rows, bf16/f16 -> 16, int8/fp8 -> 32 (sub-32-bit packs along sublanes).
    itemsize = jnp.dtype(dtype).itemsize
    return 8 * max(1, 4 // itemsize)


def _num_tensorcores():
    """Best-effort TensorCore-per-chip query; falls back to 1 (safe path)."""
    try:
        info = pltpu.get_tpu_info()
    except Exception:
        return 1
    for name in ("num_cores", "num_tensorcores", "tensorcores_per_chip",
                 "tensor_cores_per_chip", "cores_per_chip", "core_count"):
        v = getattr(info, name, None)
        if isinstance(v, int) and 1 <= v <= 8:
            return v
    return 1


def _sq_err_kernel(yp_ref, y_ref, out_ref, *, total, block_rows):
    """Accumulate sum((y_pred - y)^2) of this core's stream into an (8,128) tile."""
    i = pl.program_id(0)            # core / partial index
    j = pl.program_id(1)            # streaming (reduction) index
    steps = pl.num_programs(1)
    block_elems = block_rows * LANES

    # Logical (unclamped) block index and its first global element index.
    # int32 is fine for < 2^31 elements.
    g = i * steps + j
    base = g * block_elems

    @pl.when(j == 0)
    def _():
        out_ref[...] = jnp.zeros_like(out_ref)

    d = yp_ref[...].astype(jnp.float32) - y_ref[...].astype(jnp.float32)
    sq = d * d

    is_full = base + block_elems <= total   # block entirely inside the real data?

    @pl.when(is_full)
    def _():
        # Fold (block_rows,128) -> (8,128) with elementwise vreg adds (VPU only).
        out_ref[...] += sq.reshape(block_rows // 8, 8, LANES).sum(axis=0)

    @pl.when(jnp.logical_not(is_full))
    def _():
        # Ragged / out-of-range block: zero out every element whose global
        # index is >= the true element count (covers lane tail, row tail and
        # fully-clamped duplicate blocks).  Garbage (even NaN) in the masked
        # region is discarded by the select.
        row = lax.broadcasted_iota(jnp.int32, (block_rows, LANES), 0)
        lane = lax.broadcasted_iota(jnp.int32, (block_rows, LANES), 1)
        idx = base + row * LANES + lane
        sq_m = jnp.where(idx < total, sq, jnp.float32(0.0))
        out_ref[...] += sq_m.reshape(block_rows // 8, 8, LANES).sum(axis=0)


def rmse_loss(y_pred, y, *, max_block_rows=MAX_BLOCK_ROWS):
    """Pallas implementation of RMSELoss.forward: sqrt(mean((y_pred - y)^2))."""
    assert y_pred.shape == y.shape, "y_pred and y must have the same shape"
    total = int(y.size)

    yp_flat = y_pred.reshape(-1)
    y_flat = y.reshape(-1)

    rows = _cdiv(total, LANES)
    padded_len = rows * LANES
    if padded_len != total:
        # Only when numel isn't a multiple of 128 (rare for ML shapes); pad is
        # < 128 elements but jnp.pad still copies — kept because the lane-dense
        # (rows, 128) view needs a 128-aligned length and 1-D blocks lower to a
        # lane-sparse layout on TPU.  The common case stays zero-copy.
        yp_flat = jnp.pad(yp_flat, (0, padded_len - total))
        y_flat = jnp.pad(y_flat, (0, padded_len - total))

    yp2 = yp_flat.reshape(rows, LANES)
    y2 = y_flat.reshape(rows, LANES)

    align = max(_sublane_align(y_pred.dtype), _sublane_align(y.dtype))
    block_rows = min(max(int(max_block_rows), align), _round_up(rows, align))
    block_rows = _round_up(block_rows, align)
    num_row_blocks = _cdiv(rows, block_rows)

    # Multi-TensorCore split only where it actually exists (v7x); otherwise a
    # size-1 leading axis (pure sequential stream) — no extra padding, no extra
    # accumulator work on v5e/v6e.
    n_partials = _num_tensorcores()
    if n_partials < 2 or num_row_blocks < n_partials:
        n_partials = 1
    steps = _cdiv(num_row_blocks, n_partials)

    def in_index(i, j):
        g = i * steps + j
        # Clamp so every DMA stays in bounds; over-range logical blocks are
        # fully masked to zero inside the kernel.
        return (jnp.minimum(g, num_row_blocks - 1), 0)

    in_spec = pl.BlockSpec((block_rows, LANES), in_index)
    out_spec = pl.BlockSpec((8, LANES), lambda i, j: (i, 0))

    core_parallel = getattr(pltpu, "CORE_PARALLEL", "parallel")
    dim_sem = (core_parallel, "arbitrary") if n_partials > 1 else ("arbitrary", "arbitrary")

    kernel = functools.partial(_sq_err_kernel, total=total, block_rows=block_rows)

    partials = pl.pallas_call(
        kernel,
        out_shape=jax.ShapeDtypeStruct((n_partials * 8, LANES), jnp.float32),
        grid=(n_partials, steps),
        in_specs=[in_spec, in_spec],
        out_specs=out_spec,
        compiler_params=pltpu.CompilerParams(dimension_semantics=dim_sem),
    )(yp2, y2)

    # Tiny final reduce / divide / sqrt in the wrapper (a few XLA vector ops).
    mse = jnp.sum(partials) / total
    return jnp.sqrt(mse)


if __name__ == "__main__":
    key = jax.random.PRNGKey(0)
    k1, k2 = jax.random.split(key)

    # Small NCHW-like prediction/target pair (numel = 2048, a multiple of 128,
    # so the zero-copy fast path is exercised).
    shape = (2, 4, 16, 16)
    y = jax.random.normal(k1, shape, dtype=jnp.float32)
    y_pred = y + 0.1 * jax.random.normal(k2, shape, dtype=jnp.float32)

    rmse = jax.block_until_ready(rmse_loss(y_pred, y))
    rmse_ref = jnp.sqrt(jnp.mean((y_pred - y) ** 2))
    assert jnp.allclose(rmse, rmse_ref, rtol=1e-5, atol=1e-6), (rmse, rmse_ref)

    # Ragged numel (105 elements) exercises the in-kernel mask path.
    k3, k4 = jax.random.split(k2)
    shape2 = (3, 5, 7)
    y_b = jax.random.normal(k3, shape2, dtype=jnp.float32)
    yp_b = y_b + 0.05 * jax.random.normal(k4, shape2, dtype=jnp.float32)
    rmse_b = jax.block_until_ready(rmse_loss(yp_b, y_b))
    rmse_b_ref = jnp.sqrt(jnp.mean((yp_b - y_b) ** 2))
    assert jnp.allclose(rmse_b, rmse_b_ref, rtol=1e-5, atol=1e-6), (rmse_b, rmse_b_ref)

    # Force a multi-step grid (block_rows=8 -> 2 streaming steps) to exercise the
    # output-resident accumulation across grid iterations.
    rmse_c = jax.block_until_ready(rmse_loss(y_pred, y, max_block_rows=8))
    assert jnp.allclose(rmse_c, rmse_ref, rtol=1e-5, atol=1e-6), (rmse_c, rmse_ref)

    print("KERNEL_OK")
</pallas_src>

<mosaic_0001>
module attributes {stable_mosaic.version = 11 : i64} {
  func.func @_sq_err_kernel(%arg0: i32, %arg1: i32, %arg2: memref<16x128xf32, #tpu.memory_space<vmem>>, %arg3: memref<16x128xf32, #tpu.memory_space<vmem>>, %arg4: memref<8x128xf32, #tpu.memory_space<vmem>>) attributes {dimension_semantics = [#tpu.dimension_semantics<arbitrary>, #tpu.dimension_semantics<arbitrary>], iteration_bounds = array<i64: 1, 1>, scalar_prefetch = 0 : i64, scratch_operands = 0 : i64, tpu.core_type = #tpu.core_type<tc>, window_params = [{transform_indices = @transform_0, window_bounds = array<i64: 16, 128>}, {transform_indices = @transform_1, window_bounds = array<i64: 16, 128>}, {transform_indices = @transform_2, window_bounds = array<i64: 8, 128>}]} {
    %c1_i32 = arith.constant 1 : i32
    %0 = arith.muli %arg0, %c1_i32 : i32
    %1 = arith.addi %0, %arg1 : i32
    %c2048_i32 = arith.constant 2048 : i32
    %2 = arith.muli %1, %c2048_i32 : i32
    %c0_i32 = arith.constant 0 : i32
    %3 = arith.cmpi eq, %arg1, %c0_i32 : i32
    %4 = arith.extui %3 : i1 to i32
    %c0_i32_0 = arith.constant 0 : i32
    %5 = arith.cmpi ne, %4, %c0_i32_0 : i32
    scf.if %5 {
      %cst = arith.constant 0.000000e+00 : f32
      %17 = vector.broadcast %cst : f32 to vector<8x128xf32>
      %c0_8 = arith.constant 0 : index
      %c0_9 = arith.constant 0 : index
      %18 = vector.load %arg4[%c0_8, %c0_9] : memref<8x128xf32, #tpu.memory_space<vmem>>, vector<8x128xf32>
      tpu.vector_store %arg4[%c0_8, %c0_9], %17 {strides = array<i32>} : memref<8x128xf32, #tpu.memory_space<vmem>>, vector<8x128xf32>,
    } else {
    }
    %c0 = arith.constant 0 : index
    %c0_1 = arith.constant 0 : index
    %6 = vector.load %arg2[%c0, %c0_1] : memref<16x128xf32, #tpu.memory_space<vmem>>, vector<16x128xf32>
    %c0_2 = arith.constant 0 : index
    %c0_3 = arith.constant 0 : index
    %7 = vector.load %arg3[%c0_2, %c0_3] : memref<16x128xf32, #tpu.memory_space<vmem>>, vector<16x128xf32>
    %8 = arith.subf %6, %7 : vector<16x128xf32>
    %9 = arith.mulf %8, %8 : vector<16x128xf32>
    %c2048_i32_4 = arith.constant 2048 : i32
    %10 = arith.addi %2, %c2048_i32_4 : i32
    %c2048_i32_5 = arith.constant 2048 : i32
    %11 = arith.cmpi sle, %10, %c2048_i32_5 : i32
    %12 = arith.extui %11 : i1 to i32
    %c0_i32_6 = arith.constant 0 : i32
    %13 = arith.cmpi ne, %12, %c0_i32_6 : i32
    scf.if %13 {
      %c0_8 = arith.constant 0 : index
      %c0_9 = arith.constant 0 : index
      %17 = vector.load %arg4[%c0_8, %c0_9] : memref<8x128xf32, #tpu.memory_space<vmem>>, vector<8x128xf32>
      %18 = vector.shape_cast %9 : vector<16x128xf32> to vector<2x8x128xf32>
      %cst = arith.constant dense<0.000000e+00> : vector<8x128xf32>
      %19 = vector.multi_reduction <add>, %18, %cst [0] : vector<2x8x128xf32> to vector<8x128xf32>
      %20 = arith.addf %17, %19 : vector<8x128xf32>
      %c0_10 = arith.constant 0 : index
      %c0_11 = arith.constant 0 : index
      %21 = vector.load %arg4[%c0_10, %c0_11] : memref<8x128xf32, #tpu.memory_space<vmem>>, vector<8x128xf32>
      tpu.vector_store %arg4[%c0_10, %c0_11], %20 {strides = array<i32>} : memref<8x128xf32, #tpu.memory_space<vmem>>, vector<8x128xf32>,
    } else {
    }
    %true = arith.constant true
    %14 = arith.xori %11, %true : i1
    %15 = arith.extui %14 : i1 to i32
    %c0_i32_7 = arith.constant 0 : i32
    %16 = arith.cmpi ne, %15, %c0_i32_7 : i32
    scf.if %16 {
      %17 = tpu.iota {dimensions = array<i32: 0>} : vector<16x128xi32>
      %18 = tpu.iota {dimensions = array<i32: 1>} : vector<16x128xi32>
      %c128_i32 = arith.constant 128 : i32
      %19 = vector.broadcast %c128_i32 : i32 to vector<16x128xi32>
      %20 = arith.muli %17, %19 : vector<16x128xi32>
      %21 = vector.broadcast %2 : i32 to vector<16x128xi32>
      %22 = arith.addi %21, %20 : vector<16x128xi32>
      %23 = arith.addi %22, %18 : vector<16x128xi32>
      %c2048_i32_8 = arith.constant 2048 : i32
      %24 = vector.broadcast %c2048_i32_8 : i32 to vector<16x128xi32>
      %25 = arith.cmpi slt, %23, %24 : vector<16x128xi32>
      %cst = arith.constant 0.000000e+00 : f32
      %26 = vector.broadcast %cst : f32 to vector<16x128xf32>
      %27 = arith.select %25, %9, %26 : vector<16x128xi1>, vector<16x128xf32>
      %c0_9 = arith.constant 0 : index
      %c0_10 = arith.constant 0 : index
      %28 = vector.load %arg4[%c0_9, %c0_10] : memref<8x128xf32, #tpu.memory_space<vmem>>, vector<8x128xf32>
      %29 = vector.shape_cast %27 : vector<16x128xf32> to vector<2x8x128xf32>
      %cst_11 = arith.constant dense<0.000000e+00> : vector<8x128xf32>
      %30 = vector.multi_reduction <add>, %29, %cst_11 [0] : vector<2x8x128xf32> to vector<8x128xf32>
      %31 = arith.addf %28, %30 : vector<8x128xf32>
      %c0_12 = arith.constant 0 : index
      %c0_13 = arith.constant 0 : index
      %32 = vector.load %arg4[%c0_12, %c0_13] : memref<8x128xf32, #tpu.memory_space<vmem>>, vector<8x128xf32>
      tpu.vector_store %arg4[%c0_12, %c0_13], %31 {strides = array<i32>} : memref<8x128xf32, #tpu.memory_space<vmem>>, vector<8x128xf32>,
    } else {
    }
    return
  }
  func.func @transform_0(%arg0: i32, %arg1: i32) -> (i32, i32) {
    %c1_i32 = arith.constant 1 : i32
    %0 = arith.muli %arg0, %c1_i32 : i32
    %1 = arith.addi %0, %arg1 : i32
    %c0_i32 = arith.constant 0 : i32
    %2 = arith.minsi %1, %c0_i32 : i32
    %c0_i32_0 = arith.constant 0 : i32
    %c0_i32_1 = arith.constant 0 : i32
    return %2, %c0_i32_0 : i32, i32
  }
  func.func @transform_1(%arg0: i32, %arg1: i32) -> (i32, i32) {
    %c1_i32 = arith.constant 1 : i32
    %0 = arith.muli %arg0, %c1_i32 : i32
    %1 = arith.addi %0, %arg1 : i32
    %c0_i32 = arith.constant 0 : i32
    %2 = arith.minsi %1, %c0_i32 : i32
    %c0_i32_0 = arith.constant 0 : i32
    %c0_i32_1 = arith.constant 0 : i32
    return %2, %c0_i32_0 : i32, i32
  }
  func.func @transform_2(%arg0: i32, %arg1: i32) -> (i32, i32) {
    %c0_i32 = arith.constant 0 : i32
    %c0_i32_0 = arith.constant 0 : i32
    return %arg0, %c0_i32 : i32, i32
  }
}

</mosaic_0001>

<llo_original>
// kernel: tpu_custom_call.1
$region0: #{tpu_custom_call.1}
  #allocation0 [shape = 'u32[]', space=smem, size = 0x4, offset = 0x4, fixed_abs, tag = 'smem constant byte address 0x4 - core index']
  #allocation1 [shape = 'u32[144,128]{1,0:T(1,128)}', space=vmem, size = 0x12000, scoped, tag = 'internal scratch']
  %s0 = inlined_call_operand.hbm [shape: f32[16,128], index: 0, kind: input, shape index: {}]
  %s1 = inlined_call_operand.hbm [shape: f32[16,128], index: 1, kind: input, shape index: {}]
  %s2 = inlined_call_operand.hbm [shape: f32[8,128], index: 2, kind: output, shape index: {}]
  %s3 = sld [smem:[#allocation0]]
  $region38: #{tpu_custom_call.1} parent=0
    _
  %s5 = ssub.s32 1, %s3
  %s6 = scalar_select 0, %s5, %s3
  $region1: #{tpu_custom_call.1} parent=0
    #allocation2 [shape = 'u8[8192]{0}', space=vmem, size = 0x2000, scoped, tag = 'input window, operand 0, single buffered']
    #allocation3 [shape = 's32[1]{0}', space=sflag, size = 0x4, scoped, tag = 'scoped memory for tpu_custom_call.1']
    #allocation4 [shape = 's32[1]{0}', space=sflag, size = 0x4, scoped, tag = 'scoped memory for tpu_custom_call.1']
    #allocation5 [shape = 'u8[8192]{0}', space=vmem, size = 0x2000, scoped, tag = 'input window, operand 1, single buffered']
    #allocation6 [shape = 's32[1]{0}', space=sflag, size = 0x4, scoped, tag = 'scoped memory for tpu_custom_call.1']
    #allocation7 [shape = 'u8[4096]{0}', space=vmem, size = 0x1000, scoped, tag = 'output window, operand 0, single buffered']
    %7 = vsyncpa [#allocation3], 0
    %8 = vsyncpa [#allocation6], 0
    %9 = vsyncpa [#allocation4], 0
    // Predicated region
    $region2: #{tpu_custom_call.1} parent=1 // pred_check
      _
    $region3: #{tpu_custom_call.1} parent=1 // pred_check_branch
      %11 = sbr.rel (0) target = $region5
    $region4: #{tpu_custom_call.1} parent=1 // pred_region
      %s12 = sadd.s32 0, 0
      %p13 = scmp.lt.s32.totalorder %s12, 0
      %s14 = scalar_select %p13, %s12, 0
      %s15 = smul.u32 2, %s14
      %s17 = ssub.s32 256, 256
      %18 = vsyncadd [#allocation3], %s17
      %s19 = smul.addr %s15, 128
      %s20 = scalar_lea.hbm %s0, %s19
      %s21 = sshll.u32 [#allocation2], 4
      %s22 = int_to_ptr.vmem [resolvable:$true] %s21
      %27 = dma.hbm_to_vmem [thread:$0]  %s20, 256, %s22, [#allocation3], 128, 128, 8
    $region5: #{tpu_custom_call.1} parent=1 // pred_fallthru
      _
    // Predicated region
    $region6: #{tpu_custom_call.1} parent=1 // pred_check
      _
    $region7: #{tpu_custom_call.1} parent=1 // pred_check_branch
      %29 = sbr.rel (0) target = $region9
    $region8: #{tpu_custom_call.1} parent=1 // pred_region
      %s30 = sadd.s32 0, 0
      %p31 = scmp.lt.s32.totalorder %s30, 0
      %s32 = scalar_select %p31, %s30, 0
      %s33 = smul.u32 2, %s32
      %s35 = ssub.s32 256, 256
      %36 = vsyncadd [#allocation6], %s35
      %s37 = smul.addr %s33, 128
      %s38 = scalar_lea.hbm %s1, %s37
      %s39 = sshll.u32 [#allocation5], 4
      %s40 = int_to_ptr.vmem [resolvable:$true] %s39
      %45 = dma.hbm_to_vmem [thread:$0]  %s38, 256, %s40, [#allocation6], 128, 128, 8
    $region9: #{tpu_custom_call.1} parent=1 // pred_fallthru
      _
    // Predicated region
    $region10: #{tpu_custom_call.1} parent=1 // pred_check
      _
    $region11: #{tpu_custom_call.1} parent=1 // pred_check_branch
      %47 = sbr.rel (0) target = $region13
    $region12: #{tpu_custom_call.1} parent=1 // pred_region
      %48 = dma.done [#allocation3], 256
    $region13: #{tpu_custom_call.1} parent=1 // pred_fallthru
      _
    // Predicated region
    $region14: #{tpu_custom_call.1} parent=1 // pred_check
      _
    $region15: #{tpu_custom_call.1} parent=1 // pred_check_branch
      %50 = sbr.rel (0) target = $region17
    $region16: #{tpu_custom_call.1} parent=1 // pred_region
      %51 = dma.done [#allocation6], 256
    $region17: #{tpu_custom_call.1} parent=1 // pred_fallthru
      _
    %s52 = sadd.s32 0, 0
    %p53 = scmp.lt.s32.totalorder %s52, 0
    %s54 = scalar_select %p53, %s52, 0
    %s55 = smul.u32 2, %s54
    %s56 = sadd.s32 0, 0
    %p57 = scmp.lt.s32.totalorder %s56, 0
    %s58 = scalar_select %p57, %s56, 0
    %s59 = smul.u32 2, %s58
    %s60 = sadd.s32 0, 0
    %s61 = smul.u32 %s60, 2048
    %p62 = scmp.eq.s32.totalorder 0, 0
    // Predicated region
    $region18: #{tpu_custom_call.1} parent=1 // pred_check
      %p63 = pneg %p62
    $region19: #{tpu_custom_call.1} parent=1 // pred_check_branch
      %65 = sbr.rel (%p63) target = $region21
    $region20: #{tpu_custom_call.1} parent=1 // pred_region
      %66 = vst [vmem:[#allocation7] sm:$0xff] 0.0
    $region21: #{tpu_custom_call.1} parent=1 // pred_fallthru
      _
    %v67 = vld [vmem:[#allocation2] sm:$0xff]
    %v68 = vld [vmem:[#allocation2 + $0x8] sm:$0xff]
    %v69 = vld [vmem:[#allocation5] sm:$0xff]
    %v70 = vld [vmem:[#allocation5 + $0x8] sm:$0xff]
    %v71 = vsub.f32 %v67, %v69
    %v72 = vsub.f32 %v68, %v70
    %v73 = vmul.f32 %v71, %v71
    %v74 = vmul.f32 %v72, %v72
    %s75 = sadd.s32 %s61, 2048
    %p76 = scmp.le.s32.totalorder %s75, 2048
    // Predicated region
    $region22: #{tpu_custom_call.1} parent=1 // pred_check
      %p77 = pneg %p76
    $region23: #{tpu_custom_call.1} parent=1 // pred_check_branch
      %79 = sbr.rel (%p77) target = $region25
    $region24: #{tpu_custom_call.1} parent=1 // pred_region
      %v80 = vld [vmem:[#allocation7] sm:$0xff]
      %v81 = vadd.f32 %v73, %v74
      %v82 = vadd.f32 %v80, %v81
      %83 = vst [vmem:[#allocation7] sm:$0xff] %v82
    $region25: #{tpu_custom_call.1} parent=1 // pred_fallthru
      _
    %p84 = scmp.gt.s32.totalorder %s75, 2048
    // Predicated region
    $region26: #{tpu_custom_call.1} parent=1 // pred_check
      %p85 = pneg %p84
    $region27: #{tpu_custom_call.1} parent=1 // pred_check_branch
      %87 = sbr.rel (%p85) target = $region29
    $region28: #{tpu_custom_call.1} parent=1 // pred_region
      %v88 = vlaneseq
      %v89 = vshrl.u32 %v88, 7
      %v90 = vadd.s32 %v89, 8
      %v91 = vlaneseq
      %v92 = vand.u32 %v91, 127
      %v93 = vmul.u32 %v89, 128
      %v94 = vmul.u32 %v90, 128
      %v95 = vstv %s61
      %v96 = vadd.s32 %v95, %v93
      %v97 = vadd.s32 %v95, %v94
      %v98 = vadd.s32 %v96, %v92
      %v99 = vadd.s32 %v97, %v92
      %vm100 = vcmp.lt.s32.totalorder %v98, 2048
      %vm101 = vcmp.lt.s32.totalorder %v99, 2048
      %v102 = vsel %vm100, %v73, 0.0
      %v103 = vsel %vm101, %v74, 0.0
      %v104 = vld [vmem:[#allocation7] sm:$0xff]
      %v105 = vadd.f32 %v102, %v103
      %v106 = vadd.f32 %v104, %v105
      %107 = vst [vmem:[#allocation7] sm:$0xff] %v106
    $region29: #{tpu_custom_call.1} parent=1 // pred_fallthru
      _
    // Predicated region
    $region30: #{tpu_custom_call.1} parent=1 // pred_check
      _
    $region31: #{tpu_custom_call.1} parent=1 // pred_check_branch
      %109 = sbr.rel (0) target = $region33
    $region32: #{tpu_custom_call.1} parent=1 // pred_region
      %s111 = ssub.s32 128, 128
      %112 = vsyncadd [#allocation4], %s111
      %s114 = sshll.u32 [#allocation7], 4
      %s115 = int_to_ptr.vmem [resolvable:$true] %s114
      %117 = dma.vmem_to_hbm [thread:$0]  %s115, 128, %s2, [#allocation4]
    $region33: #{tpu_custom_call.1} parent=1 // pred_fallthru
      _
    // Predicated region
    $region34: #{tpu_custom_call.1} parent=1 // pred_check
      _
    $region35: #{tpu_custom_call.1} parent=1 // pred_check_branch
      %119 = sbr.rel (0) target = $region37
    $region36: #{tpu_custom_call.1} parent=1 // pred_region
      %120 = dma.done [#allocation4], 128
    $region37: #{tpu_custom_call.1} parent=1 // pred_fallthru
      _
    %121 = vsyncpa [#allocation3], 1
    %122 = vsyncpa [#allocation6], 1
    %123 = vsyncpa [#allocation4], 1

</llo_original>
